<compile_context>
chip_gen: v7x
topology: tpu7x:2x2x1
jax: 0.10.0
libtpu: 0.0.40
codegen_flags: <defaults>
</compile_context>

<pallas_src>
import functools
import math

import jax
import jax.numpy as jnp
from jax.experimental import pallas as pl
from jax.experimental.pallas import tpu as pltpu


def _normalize_scaled(x, inv_sqrt_t):
    """Row-wise L2 normalization (norm clamped at 1e-8, matching nn.CosineSimilarity)
    with 1/sqrt(temperature) folded in, so dot(a, b) == cos(a, b) / temperature."""
    x = x.astype(jnp.float32)
    sumsq = jnp.sum(x * x, axis=-1, keepdims=True)
    inv = jax.lax.rsqrt(jnp.maximum(sumsq, jnp.float32(1e-16)))  # == 1 / max(norm, 1e-8)
    return x * (inv * jnp.float32(inv_sqrt_t))


def _instance_loss_kernel(zi_row_ref, zj_row_ref, zi_col_ref, zj_col_ref,
                          out_ref, zni_s, znj_s, acc_i_s, acc_j_s,
                          *, inv_sqrt_t, shift):
    k = pl.program_id(1)  # column-tile (reduction) axis

    @pl.when(k == 0)
    def _init():
        # Normalize the row tiles once per row tile, keep bf16 copies for the MXU.
        zni_s[...] = _normalize_scaled(zi_row_ref[...], inv_sqrt_t).astype(jnp.bfloat16)
        znj_s[...] = _normalize_scaled(zj_row_ref[...], inv_sqrt_t).astype(jnp.bfloat16)
        acc_i_s[...] = jnp.zeros_like(acc_i_s)
        acc_j_s[...] = jnp.zeros_like(acc_j_s)

    # Normalize the current column tiles (bf16 MXU operands).
    ci = _normalize_scaled(zi_col_ref[...], inv_sqrt_t).astype(jnp.bfloat16)
    cj = _normalize_scaled(zj_col_ref[...], inv_sqrt_t).astype(jnp.bfloat16)

    zni = zni_s[...]
    znj = znj_s[...]

    # Contract both operands on the feature axis: A @ B.T without an explicit transpose.
    dn = (((1,), (1,)), ((), ()))
    s_ii = jax.lax.dot_general(zni, ci, dn, preferred_element_type=jnp.float32)
    s_ij = jax.lax.dot_general(zni, cj, dn, preferred_element_type=jnp.float32)
    s_ji = jax.lax.dot_general(znj, ci, dn, preferred_element_type=jnp.float32)
    s_jj = jax.lax.dot_general(znj, cj, dn, preferred_element_type=jnp.float32)

    # Online sum of exp with the constant shift C = 1/temperature (valid since cos <= 1),
    # accumulated over ALL columns; the diagonal term is removed at finalize.
    acc_i_s[...] += (jnp.sum(jnp.exp(s_ii - shift), axis=-1, keepdims=True)
                     + jnp.sum(jnp.exp(s_ij - shift), axis=-1, keepdims=True))
    acc_j_s[...] += (jnp.sum(jnp.exp(s_ji - shift), axis=-1, keepdims=True)
                     + jnp.sum(jnp.exp(s_jj - shift), axis=-1, keepdims=True))

    @pl.when(k == pl.num_programs(1) - 1)
    def _finalize():
        zni_f = zni_s[...].astype(jnp.float32)
        znj_f = znj_s[...].astype(jnp.float32)
        # Self-similarity (the diagonal entries of sim) and the positive-pair logit,
        # computed analytically in O(TR * D) instead of [N, N] masks.
        d_i = jnp.sum(zni_f * zni_f, axis=-1, keepdims=True)   # sim[r, r], r a z_i row
        d_j = jnp.sum(znj_f * znj_f, axis=-1, keepdims=True)   # sim[r, r], r a z_j row
        pos = jnp.sum(zni_f * znj_f, axis=-1, keepdims=True)   # sim[r, partner(r)] (symmetric)
        acc_i = jnp.maximum(acc_i_s[...] - jnp.exp(d_i - shift), jnp.float32(1e-30))
        acc_j = jnp.maximum(acc_j_s[...] - jnp.exp(d_j - shift), jnp.float32(1e-30))
        lse_i = shift + jnp.log(acc_i)
        lse_j = shift + jnp.log(acc_j)
        # Sum of the two per-row losses of this batch pair; the wrapper sums over B and /N.
        out_ref[...] = lse_i + lse_j - 2.0 * pos


def _pick_tile(n, max_tile):
    """Largest power-of-two tile <= max_tile that divides n; falls back to n (full dim,
    always a legal block) if n is small or has no such divisor."""
    if n <= max_tile:
        return n
    t = max_tile
    while t >= 8:
        if n % t == 0:
            return t
        t //= 2
    return n


def instance_loss(z_i, z_j, temperature, *, row_tile=None, col_tile=None):
    """z_i, z_j: [batch_size, D] feature vectors. Returns the scalar NT-Xent loss (f32)."""
    assert z_i.ndim == 2 and z_i.shape == z_j.shape
    B, D = z_i.shape
    N = 2 * B

    # Tiles sized for the v7x VMEM budget (64 MiB physical / 32 MiB scoped per TensorCore).
    TR = row_tile if row_tile is not None else _pick_tile(B, 256)
    TC = col_tile if col_tile is not None else _pick_tile(B, 512)
    assert B % TR == 0 and B % TC == 0, "tiles must divide the batch size"

    kernel = functools.partial(
        _instance_loss_kernel,
        inv_sqrt_t=1.0 / math.sqrt(float(temperature)),
        shift=1.0 / float(temperature),
    )

    per_pair = pl.pallas_call(
        kernel,
        out_shape=jax.ShapeDtypeStruct((B, 1), jnp.float32),
        grid_spec=pltpu.PrefetchScalarGridSpec(
            num_scalar_prefetch=0,
            grid=(B // TR, B // TC),
            in_specs=[
                pl.BlockSpec((TR, D), lambda j, k: (j, 0)),   # z_i row tile
                pl.BlockSpec((TR, D), lambda j, k: (j, 0)),   # z_j row tile (partners)
                pl.BlockSpec((TC, D), lambda j, k: (k, 0)),   # z_i column tile
                pl.BlockSpec((TC, D), lambda j, k: (k, 0)),   # z_j column tile
            ],
            out_specs=pl.BlockSpec((TR, 1), lambda j, k: (j, 0)),
            scratch_shapes=[
                pltpu.VMEM((TR, D), jnp.bfloat16),   # normalized z_i row tile
                pltpu.VMEM((TR, D), jnp.bfloat16),   # normalized z_j row tile
                pltpu.VMEM((TR, 1), jnp.float32),    # running sum-exp (z_i rows)
                pltpu.VMEM((TR, 1), jnp.float32),    # running sum-exp (z_j rows)
            ],
        ),
        compiler_params=pltpu.CompilerParams(
            dimension_semantics=("parallel", "arbitrary"),
            vmem_limit_bytes=32 * 1024 * 1024,
        ),
    )(z_i, z_j, z_i, z_j)

    return jnp.sum(per_pair) / jnp.float32(N)


def _reference_instance_loss(z_i, z_j, temperature):
    """Pure-JAX f32 reference mirroring the PyTorch forward."""
    B = z_i.shape[0]
    N = 2 * B
    z = jnp.concatenate([z_i, z_j], axis=0).astype(jnp.float32)
    norm = jnp.maximum(jnp.linalg.norm(z, axis=-1, keepdims=True), 1e-8)
    zn = z / norm
    sim = (zn @ zn.T) / temperature
    idx = jnp.arange(N)
    partner = (idx + B) % N
    pos = sim[idx, partner]
    sim_no_diag = jnp.where(jnp.eye(N, dtype=bool), -jnp.inf, sim)
    lse = jax.scipy.special.logsumexp(sim_no_diag, axis=-1)
    return jnp.sum(lse - pos) / N


if __name__ == "__main__":
    # TODO(synk): dist.get_world_size() is assumed to be 1 (no cross-process feature gather).
    temperature = 0.5

    # Small shapes consistent with the module's forward (flat [batch, feat] vectors).
    k1, k2 = jax.random.split(jax.random.PRNGKey(0))
    z_i = jax.random.normal(k1, (8, 32), dtype=jnp.float32)
    z_j = jax.random.normal(k2, (8, 32), dtype=jnp.float32)

    loss = jax.block_until_ready(instance_loss(z_i, z_j, temperature))
    ref = jax.block_until_ready(_reference_instance_loss(z_i, z_j, temperature))
    assert jnp.isfinite(loss), ("non-finite loss", loss)
    # MXU operands are bf16, so compare against the f32 reference with a bf16-level tolerance.
    assert jnp.allclose(loss, ref, rtol=1e-2, atol=1e-2), (loss, ref)

    # Second check: exercise the multi-tile online-logsumexp grid path (grid = (4, 2)).
    k3, k4 = jax.random.split(jax.random.PRNGKey(1))
    z_i2 = jax.random.normal(k3, (32, 64), dtype=jnp.float32)
    z_j2 = jax.random.normal(k4, (32, 64), dtype=jnp.float32)
    loss2 = jax.block_until_ready(
        instance_loss(z_i2, z_j2, temperature, row_tile=8, col_tile=16))
    ref2 = jax.block_until_ready(_reference_instance_loss(z_i2, z_j2, temperature))
    assert jnp.isfinite(loss2), ("non-finite loss", loss2)
    assert jnp.allclose(loss2, ref2, rtol=1e-2, atol=1e-2), (loss2, ref2)

    print("KERNEL_OK")
</pallas_src>

<mosaic_0001>
module attributes {stable_mosaic.version = 11 : i64} {
  func.func @_instance_loss_kernel(%arg0: i32, %arg1: i32, %arg2: memref<8x32xf32, #tpu.memory_space<vmem>>, %arg3: memref<8x32xf32, #tpu.memory_space<vmem>>, %arg4: memref<8x32xf32, #tpu.memory_space<vmem>>, %arg5: memref<8x32xf32, #tpu.memory_space<vmem>>, %arg6: memref<8x1xf32, #tpu.memory_space<vmem>>, %arg7: memref<8x32xbf16, #tpu.memory_space<vmem>>, %arg8: memref<8x32xbf16, #tpu.memory_space<vmem>>, %arg9: memref<8x1xf32, #tpu.memory_space<vmem>>, %arg10: memref<8x1xf32, #tpu.memory_space<vmem>>) attributes {dimension_semantics = [#tpu.dimension_semantics<parallel>, #tpu.dimension_semantics<arbitrary>], iteration_bounds = array<i64: 1, 1>, scalar_prefetch = 0 : i64, scratch_operands = 4 : i64, tpu.core_type = #tpu.core_type<tc>, window_params = [{transform_indices = @transform_0, window_bounds = array<i64: 8, 32>}, {transform_indices = @transform_1, window_bounds = array<i64: 8, 32>}, {transform_indices = @transform_2, window_bounds = array<i64: 8, 32>}, {transform_indices = @transform_3, window_bounds = array<i64: 8, 32>}, {transform_indices = @transform_4, window_bounds = array<i64: 8, 1>}]} {
    %c0_i32 = arith.constant 0 : i32
    %0 = arith.cmpi eq, %arg1, %c0_i32 : i32
    %1 = arith.extui %0 : i1 to i32
    %c0_i32_0 = arith.constant 0 : i32
    %2 = arith.cmpi ne, %1, %c0_i32_0 : i32
    scf.if %2 {
      %c0_35 = arith.constant 0 : index
      %c0_36 = arith.constant 0 : index
      %64 = vector.load %arg2[%c0_35, %c0_36] : memref<8x32xf32, #tpu.memory_space<vmem>>, vector<8x32xf32>
      %65 = arith.mulf %64, %64 : vector<8x32xf32>
      %cst_37 = arith.constant dense<0.000000e+00> : vector<8xf32>
      %66 = vector.multi_reduction <add>, %65, %cst_37 [1] : vector<8x32xf32> to vector<8xf32>
      %67 = vector.shape_cast %66 : vector<8xf32> to vector<8x1xf32>
      %cst_38 = arith.constant 1.000000e-16 : f32
      %68 = vector.broadcast %cst_38 : f32 to vector<8x1xf32>
      %69 = arith.maximumf %67, %68 : vector<8x1xf32>
      %70 = math.rsqrt %69 : vector<8x1xf32>
      %cst_39 = arith.constant 1.41421354 : f32
      %71 = vector.broadcast %cst_39 : f32 to vector<8x1xf32>
      %72 = arith.mulf %70, %71 : vector<8x1xf32>
      %73 = vector.broadcast %72 : vector<8x1xf32> to vector<8x32xf32>
      %74 = arith.mulf %64, %73 : vector<8x32xf32>
      %75 = arith.truncf %74 : vector<8x32xf32> to vector<8x32xbf16>
      %c0_40 = arith.constant 0 : index
      %c0_41 = arith.constant 0 : index
      %76 = vector.load %arg7[%c0_40, %c0_41] : memref<8x32xbf16, #tpu.memory_space<vmem>>, vector<8x32xbf16>
      tpu.vector_store %arg7[%c0_40, %c0_41], %75 {strides = array<i32>} : memref<8x32xbf16, #tpu.memory_space<vmem>>, vector<8x32xbf16>,
      %c0_42 = arith.constant 0 : index
      %c0_43 = arith.constant 0 : index
      %77 = vector.load %arg3[%c0_42, %c0_43] : memref<8x32xf32, #tpu.memory_space<vmem>>, vector<8x32xf32>
      %78 = arith.mulf %77, %77 : vector<8x32xf32>
      %cst_44 = arith.constant dense<0.000000e+00> : vector<8xf32>
      %79 = vector.multi_reduction <add>, %78, %cst_44 [1] : vector<8x32xf32> to vector<8xf32>
      %80 = vector.shape_cast %79 : vector<8xf32> to vector<8x1xf32>
      %cst_45 = arith.constant 1.000000e-16 : f32
      %81 = vector.broadcast %cst_45 : f32 to vector<8x1xf32>
      %82 = arith.maximumf %80, %81 : vector<8x1xf32>
      %83 = math.rsqrt %82 : vector<8x1xf32>
      %cst_46 = arith.constant 1.41421354 : f32
      %84 = vector.broadcast %cst_46 : f32 to vector<8x1xf32>
      %85 = arith.mulf %83, %84 : vector<8x1xf32>
      %86 = vector.broadcast %85 : vector<8x1xf32> to vector<8x32xf32>
      %87 = arith.mulf %77, %86 : vector<8x32xf32>
      %88 = arith.truncf %87 : vector<8x32xf32> to vector<8x32xbf16>
      %c0_47 = arith.constant 0 : index
      %c0_48 = arith.constant 0 : index
      %89 = vector.load %arg8[%c0_47, %c0_48] : memref<8x32xbf16, #tpu.memory_space<vmem>>, vector<8x32xbf16>
      tpu.vector_store %arg8[%c0_47, %c0_48], %88 {strides = array<i32>} : memref<8x32xbf16, #tpu.memory_space<vmem>>, vector<8x32xbf16>,
      %cst_49 = arith.constant 0.000000e+00 : f32
      %90 = vector.broadcast %cst_49 : f32 to vector<8x1xf32>
      %c0_50 = arith.constant 0 : index
      %c0_51 = arith.constant 0 : index
      %91 = vector.load %arg9[%c0_50, %c0_51] : memref<8x1xf32, #tpu.memory_space<vmem>>, vector<8x1xf32>
      tpu.vector_store %arg9[%c0_50, %c0_51], %90 {strides = array<i32>} : memref<8x1xf32, #tpu.memory_space<vmem>>, vector<8x1xf32>,
      %cst_52 = arith.constant 0.000000e+00 : f32
      %92 = vector.broadcast %cst_52 : f32 to vector<8x1xf32>
      %c0_53 = arith.constant 0 : index
      %c0_54 = arith.constant 0 : index
      %93 = vector.load %arg10[%c0_53, %c0_54] : memref<8x1xf32, #tpu.memory_space<vmem>>, vector<8x1xf32>
      tpu.vector_store %arg10[%c0_53, %c0_54], %92 {strides = array<i32>} : memref<8x1xf32, #tpu.memory_space<vmem>>, vector<8x1xf32>,
    } else {
    }
    %c0 = arith.constant 0 : index
    %c0_1 = arith.constant 0 : index
    %3 = vector.load %arg4[%c0, %c0_1] : memref<8x32xf32, #tpu.memory_space<vmem>>, vector<8x32xf32>
    %4 = arith.mulf %3, %3 : vector<8x32xf32>
    %cst = arith.constant dense<0.000000e+00> : vector<8xf32>
    %5 = vector.multi_reduction <add>, %4, %cst [1] : vector<8x32xf32> to vector<8xf32>
    %6 = vector.shape_cast %5 : vector<8xf32> to vector<8x1xf32>
    %cst_2 = arith.constant 1.000000e-16 : f32
    %7 = vector.broadcast %cst_2 : f32 to vector<8x1xf32>
    %8 = arith.maximumf %6, %7 : vector<8x1xf32>
    %9 = math.rsqrt %8 : vector<8x1xf32>
    %cst_3 = arith.constant 1.41421354 : f32
    %10 = vector.broadcast %cst_3 : f32 to vector<8x1xf32>
    %11 = arith.mulf %9, %10 : vector<8x1xf32>
    %12 = vector.broadcast %11 : vector<8x1xf32> to vector<8x32xf32>
    %13 = arith.mulf %3, %12 : vector<8x32xf32>
    %14 = arith.truncf %13 : vector<8x32xf32> to vector<8x32xbf16>
    %c0_4 = arith.constant 0 : index
    %c0_5 = arith.constant 0 : index
    %15 = vector.load %arg5[%c0_4, %c0_5] : memref<8x32xf32, #tpu.memory_space<vmem>>, vector<8x32xf32>
    %16 = arith.mulf %15, %15 : vector<8x32xf32>
    %cst_6 = arith.constant dense<0.000000e+00> : vector<8xf32>
    %17 = vector.multi_reduction <add>, %16, %cst_6 [1] : vector<8x32xf32> to vector<8xf32>
    %18 = vector.shape_cast %17 : vector<8xf32> to vector<8x1xf32>
    %cst_7 = arith.constant 1.000000e-16 : f32
    %19 = vector.broadcast %cst_7 : f32 to vector<8x1xf32>
    %20 = arith.maximumf %18, %19 : vector<8x1xf32>
    %21 = math.rsqrt %20 : vector<8x1xf32>
    %cst_8 = arith.constant 1.41421354 : f32
    %22 = vector.broadcast %cst_8 : f32 to vector<8x1xf32>
    %23 = arith.mulf %21, %22 : vector<8x1xf32>
    %24 = vector.broadcast %23 : vector<8x1xf32> to vector<8x32xf32>
    %25 = arith.mulf %15, %24 : vector<8x32xf32>
    %26 = arith.truncf %25 : vector<8x32xf32> to vector<8x32xbf16>
    %c0_9 = arith.constant 0 : index
    %c0_10 = arith.constant 0 : index
    %27 = vector.load %arg7[%c0_9, %c0_10] : memref<8x32xbf16, #tpu.memory_space<vmem>>, vector<8x32xbf16>
    %c0_11 = arith.constant 0 : index
    %c0_12 = arith.constant 0 : index
    %28 = vector.load %arg8[%c0_11, %c0_12] : memref<8x32xbf16, #tpu.memory_space<vmem>>, vector<8x32xbf16>
    %cst_13 = arith.constant dense<0.000000e+00> : vector<8x8xf32>
    %29 = tpu.matmul %27, %14, %cst_13 {dimension_numbers = #tpu.dot_dimension_numbers<[1], [1], [0], [0], [0, 0, 1, 0], [], []>} : vector<8x32xbf16>, vector<8x32xbf16>, vector<8x8xf32> -> vector<8x8xf32>
    %cst_14 = arith.constant dense<0.000000e+00> : vector<8x8xf32>
    %30 = tpu.matmul %27, %26, %cst_14 {dimension_numbers = #tpu.dot_dimension_numbers<[1], [1], [0], [0], [0, 0, 1, 0], [], []>} : vector<8x32xbf16>, vector<8x32xbf16>, vector<8x8xf32> -> vector<8x8xf32>
    %cst_15 = arith.constant dense<0.000000e+00> : vector<8x8xf32>
    %31 = tpu.matmul %28, %14, %cst_15 {dimension_numbers = #tpu.dot_dimension_numbers<[1], [1], [0], [0], [0, 0, 1, 0], [], []>} : vector<8x32xbf16>, vector<8x32xbf16>, vector<8x8xf32> -> vector<8x8xf32>
    %cst_16 = arith.constant dense<0.000000e+00> : vector<8x8xf32>
    %32 = tpu.matmul %28, %26, %cst_16 {dimension_numbers = #tpu.dot_dimension_numbers<[1], [1], [0], [0], [0, 0, 1, 0], [], []>} : vector<8x32xbf16>, vector<8x32xbf16>, vector<8x8xf32> -> vector<8x8xf32>
    %c0_17 = arith.constant 0 : index
    %c0_18 = arith.constant 0 : index
    %33 = vector.load %arg9[%c0_17, %c0_18] : memref<8x1xf32, #tpu.memory_space<vmem>>, vector<8x1xf32>
    %cst_19 = arith.constant 2.000000e+00 : f32
    %34 = vector.broadcast %cst_19 : f32 to vector<8x8xf32>
    %35 = arith.subf %29, %34 : vector<8x8xf32>
    %36 = math.exp %35 : vector<8x8xf32>
    %cst_20 = arith.constant dense<0.000000e+00> : vector<8xf32>
    %37 = vector.multi_reduction <add>, %36, %cst_20 [1] : vector<8x8xf32> to vector<8xf32>
    %38 = vector.shape_cast %37 : vector<8xf32> to vector<8x1xf32>
    %cst_21 = arith.constant 2.000000e+00 : f32
    %39 = vector.broadcast %cst_21 : f32 to vector<8x8xf32>
    %40 = arith.subf %30, %39 : vector<8x8xf32>
    %41 = math.exp %40 : vector<8x8xf32>
    %cst_22 = arith.constant dense<0.000000e+00> : vector<8xf32>
    %42 = vector.multi_reduction <add>, %41, %cst_22 [1] : vector<8x8xf32> to vector<8xf32>
    %43 = vector.shape_cast %42 : vector<8xf32> to vector<8x1xf32>
    %44 = arith.addf %38, %43 : vector<8x1xf32>
    %45 = arith.addf %33, %44 : vector<8x1xf32>
    %c0_23 = arith.constant 0 : index
    %c0_24 = arith.constant 0 : index
    %46 = vector.load %arg9[%c0_23, %c0_24] : memref<8x1xf32, #tpu.memory_space<vmem>>, vector<8x1xf32>
    tpu.vector_store %arg9[%c0_23, %c0_24], %45 {strides = array<i32>} : memref<8x1xf32, #tpu.memory_space<vmem>>, vector<8x1xf32>,
    %c0_25 = arith.constant 0 : index
    %c0_26 = arith.constant 0 : index
    %47 = vector.load %arg10[%c0_25, %c0_26] : memref<8x1xf32, #tpu.memory_space<vmem>>, vector<8x1xf32>
    %cst_27 = arith.constant 2.000000e+00 : f32
    %48 = vector.broadcast %cst_27 : f32 to vector<8x8xf32>
    %49 = arith.subf %31, %48 : vector<8x8xf32>
    %50 = math.exp %49 : vector<8x8xf32>
    %cst_28 = arith.constant dense<0.000000e+00> : vector<8xf32>
    %51 = vector.multi_reduction <add>, %50, %cst_28 [1] : vector<8x8xf32> to vector<8xf32>
    %52 = vector.shape_cast %51 : vector<8xf32> to vector<8x1xf32>
    %cst_29 = arith.constant 2.000000e+00 : f32
    %53 = vector.broadcast %cst_29 : f32 to vector<8x8xf32>
    %54 = arith.subf %32, %53 : vector<8x8xf32>
    %55 = math.exp %54 : vector<8x8xf32>
    %cst_30 = arith.constant dense<0.000000e+00> : vector<8xf32>
    %56 = vector.multi_reduction <add>, %55, %cst_30 [1] : vector<8x8xf32> to vector<8xf32>
    %57 = vector.shape_cast %56 : vector<8xf32> to vector<8x1xf32>
    %58 = arith.addf %52, %57 : vector<8x1xf32>
    %59 = arith.addf %47, %58 : vector<8x1xf32>
    %c0_31 = arith.constant 0 : index
    %c0_32 = arith.constant 0 : index
    %60 = vector.load %arg10[%c0_31, %c0_32] : memref<8x1xf32, #tpu.memory_space<vmem>>, vector<8x1xf32>
    tpu.vector_store %arg10[%c0_31, %c0_32], %59 {strides = array<i32>} : memref<8x1xf32, #tpu.memory_space<vmem>>, vector<8x1xf32>,
    %c0_i32_33 = arith.constant 0 : i32
    %61 = arith.cmpi eq, %arg1, %c0_i32_33 : i32
    %62 = arith.extui %61 : i1 to i32
    %c0_i32_34 = arith.constant 0 : i32
    %63 = arith.cmpi ne, %62, %c0_i32_34 : i32
    scf.if %63 {
      %c0_35 = arith.constant 0 : index
      %c0_36 = arith.constant 0 : index
      %64 = vector.load %arg7[%c0_35, %c0_36] : memref<8x32xbf16, #tpu.memory_space<vmem>>, vector<8x32xbf16>
      %65 = arith.extf %64 : vector<8x32xbf16> to vector<8x32xf32>
      %c0_37 = arith.constant 0 : index
      %c0_38 = arith.constant 0 : index
      %66 = vector.load %arg8[%c0_37, %c0_38] : memref<8x32xbf16, #tpu.memory_space<vmem>>, vector<8x32xbf16>
      %67 = arith.extf %66 : vector<8x32xbf16> to vector<8x32xf32>
      %68 = arith.mulf %65, %65 : vector<8x32xf32>
      %cst_39 = arith.constant dense<0.000000e+00> : vector<8xf32>
      %69 = vector.multi_reduction <add>, %68, %cst_39 [1] : vector<8x32xf32> to vector<8xf32>
      %70 = vector.shape_cast %69 : vector<8xf32> to vector<8x1xf32>
      %71 = arith.mulf %67, %67 : vector<8x32xf32>
      %cst_40 = arith.constant dense<0.000000e+00> : vector<8xf32>
      %72 = vector.multi_reduction <add>, %71, %cst_40 [1] : vector<8x32xf32> to vector<8xf32>
      %73 = vector.shape_cast %72 : vector<8xf32> to vector<8x1xf32>
      %74 = arith.mulf %65, %67 : vector<8x32xf32>
      %cst_41 = arith.constant dense<0.000000e+00> : vector<8xf32>
      %75 = vector.multi_reduction <add>, %74, %cst_41 [1] : vector<8x32xf32> to vector<8xf32>
      %76 = vector.shape_cast %75 : vector<8xf32> to vector<8x1xf32>
      %c0_42 = arith.constant 0 : index
      %c0_43 = arith.constant 0 : index
      %77 = vector.load %arg9[%c0_42, %c0_43] : memref<8x1xf32, #tpu.memory_space<vmem>>, vector<8x1xf32>
      %cst_44 = arith.constant 2.000000e+00 : f32
      %78 = vector.broadcast %cst_44 : f32 to vector<8x1xf32>
      %79 = arith.subf %70, %78 : vector<8x1xf32>
      %80 = math.exp %79 : vector<8x1xf32>
      %81 = arith.subf %77, %80 : vector<8x1xf32>
      %cst_45 = arith.constant 1.000000e-30 : f32
      %82 = vector.broadcast %cst_45 : f32 to vector<8x1xf32>
      %83 = arith.maximumf %81, %82 : vector<8x1xf32>
      %c0_46 = arith.constant 0 : index
      %c0_47 = arith.constant 0 : index
      %84 = vector.load %arg10[%c0_46, %c0_47] : memref<8x1xf32, #tpu.memory_space<vmem>>, vector<8x1xf32>
      %cst_48 = arith.constant 2.000000e+00 : f32
      %85 = vector.broadcast %cst_48 : f32 to vector<8x1xf32>
      %86 = arith.subf %73, %85 : vector<8x1xf32>
      %87 = math.exp %86 : vector<8x1xf32>
      %88 = arith.subf %84, %87 : vector<8x1xf32>
      %cst_49 = arith.constant 1.000000e-30 : f32
      %89 = vector.broadcast %cst_49 : f32 to vector<8x1xf32>
      %90 = arith.maximumf %88, %89 : vector<8x1xf32>
      %91 = math.log %83 : vector<8x1xf32>
      %cst_50 = arith.constant 2.000000e+00 : f32
      %92 = vector.broadcast %cst_50 : f32 to vector<8x1xf32>
      %93 = arith.addf %92, %91 : vector<8x1xf32>
      %94 = math.log %90 : vector<8x1xf32>
      %cst_51 = arith.constant 2.000000e+00 : f32
      %95 = vector.broadcast %cst_51 : f32 to vector<8x1xf32>
      %96 = arith.addf %95, %94 : vector<8x1xf32>
      %97 = arith.addf %93, %96 : vector<8x1xf32>
      %cst_52 = arith.constant 2.000000e+00 : f32
      %98 = vector.broadcast %cst_52 : f32 to vector<8x1xf32>
      %99 = arith.mulf %98, %76 : vector<8x1xf32>
      %100 = arith.subf %97, %99 : vector<8x1xf32>
      %c0_53 = arith.constant 0 : index
      %c0_54 = arith.constant 0 : index
      %101 = vector.load %arg6[%c0_53, %c0_54] : memref<8x1xf32, #tpu.memory_space<vmem>>, vector<8x1xf32>
      tpu.vector_store %arg6[%c0_53, %c0_54], %100 {strides = array<i32>} : memref<8x1xf32, #tpu.memory_space<vmem>>, vector<8x1xf32>,
    } else {
    }
    return
  }
  func.func @transform_0(%arg0: i32, %arg1: i32) -> (i32, i32) {
    %c0_i32 = arith.constant 0 : i32
    %c0_i32_0 = arith.constant 0 : i32
    return %arg0, %c0_i32 : i32, i32
  }
  func.func @transform_1(%arg0: i32, %arg1: i32) -> (i32, i32) {
    %c0_i32 = arith.constant 0 : i32
    %c0_i32_0 = arith.constant 0 : i32
    return %arg0, %c0_i32 : i32, i32
  }
  func.func @transform_2(%arg0: i32, %arg1: i32) -> (i32, i32) {
    %c0_i32 = arith.constant 0 : i32
    %c0_i32_0 = arith.constant 0 : i32
    return %arg1, %c0_i32 : i32, i32
  }
  func.func @transform_3(%arg0: i32, %arg1: i32) -> (i32, i32) {
    %c0_i32 = arith.constant 0 : i32
    %c0_i32_0 = arith.constant 0 : i32
    return %arg1, %c0_i32 : i32, i32
  }
  func.func @transform_4(%arg0: i32, %arg1: i32) -> (i32, i32) {
    %c0_i32 = arith.constant 0 : i32
    %c0_i32_0 = arith.constant 0 : i32
    return %arg0, %c0_i32 : i32, i32
  }
}

</mosaic_0001>

<llo_original>
// kernel: tpu_custom_call.1
$region0: #{tpu_custom_call.1}
  #allocation0 [shape = 'u32[]', space=smem, size = 0x4, offset = 0x4, fixed_abs, tag = 'smem constant byte address 0x4 - core index']
  #allocation1 [shape = 'u32[144,128]{1,0:T(1,128)}', space=vmem, size = 0x12000, scoped, tag = 'internal scratch']
  #allocation2 [shape = 'bf16[8,32]{1,0:T(8,128)(2,1)}', space=vmem, size = 0x800, scoped, tag = 'scratch operand']
  #allocation3 [shape = 'bf16[8,32]{1,0:T(8,128)(2,1)}', space=vmem, size = 0x800, scoped, tag = 'scratch operand']
  #allocation4 [shape = 'f32[8,1]{1,0:T(8,128)}', space=vmem, size = 0x1000, scoped, tag = 'scratch operand']
  #allocation5 [shape = 'f32[8,1]{1,0:T(8,128)}', space=vmem, size = 0x1000, scoped, tag = 'scratch operand']
  %s0 = inlined_call_operand.hbm [shape: f32[8,32], index: 0, kind: input, shape index: {}]
  %s1 = inlined_call_operand.hbm [shape: f32[8,32], index: 1, kind: input, shape index: {}]
  %s2 = inlined_call_operand.hbm [shape: f32[8,32], index: 2, kind: input, shape index: {}]
  %s3 = inlined_call_operand.vmem [shape: f32[8,32], index: 3, kind: input, shape index: {}]
  %s4 = inlined_call_operand.vmem [shape: f32[8,1], index: 4, kind: output, shape index: {}]
  %s5 = sld [smem:[#allocation0]]
  $region46: #{tpu_custom_call.1} parent=0
    _
  %s7 = ssub.s32 1, %s5
  %s8 = scalar_select 0, %s7, %s5
  $region1: #{tpu_custom_call.1} parent=0
    #allocation6 [shape = 'u8[4096]{0}', space=vmem, size = 0x1000, scoped, tag = 'input window, operand 0, single buffered']
    #allocation7 [shape = 's32[1]{0}', space=sflag, size = 0x4, scoped, tag = 'scoped memory for tpu_custom_call.1']
    #allocation8 [shape = 'u8[4096]{0}', space=vmem, size = 0x1000, scoped, tag = 'input window, operand 1, single buffered']
    #allocation9 [shape = 's32[1]{0}', space=sflag, size = 0x4, scoped, tag = 'scoped memory for tpu_custom_call.1']
    #allocation10 [shape = 'u8[4096]{0}', space=vmem, size = 0x1000, scoped, tag = 'input window, operand 2, single buffered']
    %9 = vsyncpa [#allocation7], 0
    %10 = vsyncpa [#allocation9], 0
    // Predicated region
    $region2: #{tpu_custom_call.1} parent=1 // pred_check
      _
    $region3: #{tpu_custom_call.1} parent=1 // pred_check_branch
      %12 = sbr.rel (0) target = $region5
    $region4: #{tpu_custom_call.1} parent=1 // pred_region
      %s14 = ssub.s32 128, 128
      %15 = vsyncadd [#allocation7], %s14
      %s17 = sshll.u32 [#allocation6], 4
      %s18 = int_to_ptr.vmem [resolvable:$true] %s17
      %20 = dma.hbm_to_vmem [thread:$0]  %s0, 128, %s18, [#allocation7]
    $region5: #{tpu_custom_call.1} parent=1 // pred_fallthru
      _
    // Predicated region
    $region6: #{tpu_custom_call.1} parent=1 // pred_check
      _
    $region7: #{tpu_custom_call.1} parent=1 // pred_check_branch
      %22 = sbr.rel (0) target = $region9
    $region8: #{tpu_custom_call.1} parent=1 // pred_region
      %s24 = ssub.s32 128, 128
      %25 = vsyncadd [#allocation9], %s24
      %s27 = sshll.u32 [#allocation8], 4
      %s28 = int_to_ptr.vmem [resolvable:$true] %s27
      %30 = dma.hbm_to_vmem [thread:$0]  %s1, 128, %s28, [#allocation9]
    $region9: #{tpu_custom_call.1} parent=1 // pred_fallthru
      _
    // Predicated region
    $region10: #{tpu_custom_call.1} parent=1 // pred_check
      _
    $region11: #{tpu_custom_call.1} parent=1 // pred_check_branch
      %32 = sbr.rel (0) target = $region13
    $region12: #{tpu_custom_call.1} parent=1 // pred_region
      %s34 = ssub.s32 128, 128
      %35 = vsyncadd [#allocation9], %s34
      %s37 = sshll.u32 [#allocation10], 4
      %s38 = int_to_ptr.vmem [resolvable:$true] %s37
      %40 = dma.hbm_to_vmem [thread:$0]  %s2, 128, %s38, [#allocation9]
    $region13: #{tpu_custom_call.1} parent=1 // pred_fallthru
      _
    // Predicated region
    $region14: #{tpu_custom_call.1} parent=1 // pred_check
      _
    $region15: #{tpu_custom_call.1} parent=1 // pred_check_branch
      %42 = sbr.rel (0) target = $region17
    $region16: #{tpu_custom_call.1} parent=1 // pred_region
      _
    $region17: #{tpu_custom_call.1} parent=1 // pred_fallthru
      _
    // Predicated region
    $region18: #{tpu_custom_call.1} parent=1 // pred_check
      _
    $region19: #{tpu_custom_call.1} parent=1 // pred_check_branch
      %44 = sbr.rel (0) target = $region21
    $region20: #{tpu_custom_call.1} parent=1 // pred_region
      %45 = dma.done [#allocation7], 128
    $region21: #{tpu_custom_call.1} parent=1 // pred_fallthru
      _
    // Predicated region
    $region22: #{tpu_custom_call.1} parent=1 // pred_check
      _
    $region23: #{tpu_custom_call.1} parent=1 // pred_check_branch
      %47 = sbr.rel (0) target = $region25
    $region24: #{tpu_custom_call.1} parent=1 // pred_region
      %48 = dma.done [#allocation9], 128
    $region25: #{tpu_custom_call.1} parent=1 // pred_fallthru
      _
    // Predicated region
    $region26: #{tpu_custom_call.1} parent=1 // pred_check
      _
    $region27: #{tpu_custom_call.1} parent=1 // pred_check_branch
      %50 = sbr.rel (0) target = $region29
    $region28: #{tpu_custom_call.1} parent=1 // pred_region
      %51 = dma.done [#allocation9], 128
    $region29: #{tpu_custom_call.1} parent=1 // pred_fallthru
      _
    %p53 = scmp.eq.s32.totalorder 0, 0
    // Predicated region
    $region30: #{tpu_custom_call.1} parent=1 // pred_check
      %p54 = pneg %p53
    $region31: #{tpu_custom_call.1} parent=1 // pred_check_branch
      %56 = sbr.rel (%p54) target = $region33
    $region32: #{tpu_custom_call.1} parent=1 // pred_region
      %v57 = vld [vmem:[#allocation6] sm:$0xff]
      %v58 = vmul.f32 %v57, %v57
      %vm59 = vcmask 261120
      %v60 = vsel %vm59, %v58, 0.0
      %61 = vadd.xlane.f32.xlu0 %v60
      %v62 = vpop.xlane.xlu0 %61
      %v63 = vmax.f32 %v62, 1e-16
      %v64 = vrsqrt.pop %v63
      %v65 = vmul.f32 %v64, 1.4142135
      %v66 = vmul.f32 %v57, %v65
      %v67 = vpack.c.bf16 %v66, %v66
      %vm68 = vcmask 257024
      %69 = vst.msk [vmem:[#allocation2] sm:$0xf] %vm68, %v67
      %v70 = vld [vmem:[#allocation8] sm:$0xff]
      %v71 = vmul.f32 %v70, %v70
      %v72 = vsel %vm59, %v71, 0.0
      %73 = vadd.xlane.f32.xlu0 %v72
      %v74 = vpop.xlane.xlu0 %73
      %v75 = vmax.f32 %v74, 1e-16
      %v76 = vrsqrt.pop %v75
      %v77 = vmul.f32 %v76, 1.4142135
      %v78 = vmul.f32 %v70, %v77
      %v79 = vpack.c.bf16 %v78, %v78
      %80 = vst.msk [vmem:[#allocation3] sm:$0xf] %vm68, %v79
      %vm81 = vcmask 7168
      %82 = vst.msk [vmem:[#allocation4] sm:$0xff] %vm81, 0.0
      %83 = vst.msk [vmem:[#allocation5] sm:$0xff] %vm81, 0.0
    $region33: #{tpu_custom_call.1} parent=1 // pred_fallthru
      _
    %v84 = vld [vmem:[#allocation10] sm:$0xff]
    %v85 = vmul.f32 %v84, %v84
    %vm86 = vcmask 261120
    %v87 = vsel %vm86, %v85, 0.0
    %88 = vadd.xlane.f32.xlu0 %v87
    %v89 = vpop.xlane.xlu0 %88
    %v90 = vmax.f32 %v89, 1e-16
    %v91 = vrsqrt.pop %v90
    %v92 = vmul.f32 %v91, 1.4142135
    %v93 = vmul.f32 %v84, %v92
    %v94 = vpack.c.bf16 %v93, %v93
    %v95 = vld [vmem:[%s3] sm:$0xff]
    %v96 = vmul.f32 %v95, %v95
    %v97 = vsel %vm86, %v96, 0.0
    %98 = vadd.xlane.f32.xlu0 %v97
    %v99 = vpop.xlane.xlu0 %98
    %v100 = vmax.f32 %v99, 1e-16
    %v101 = vrsqrt.pop %v100
    %v102 = vmul.f32 %v101, 1.4142135
    %v103 = vmul.f32 %v95, %v102
    %v104 = vpack.c.bf16 %v103, %v103
    %v105 = vld [vmem:[#allocation2] sm:$0xf]
    %v106 = vld [vmem:[#allocation3] sm:$0xf]
    %v108 = vsel %vm86, %v105, 0
    %v111 = vsel %vm86, %v94, 0
    %113 = vmatprep.subr.bf16.mxu0 0
    %114 = vmatpush1.bf16.xpose.msra.mxu0 %v111
    %115 = vmatprep.subr.bf16.mxu0 0
    %116 = vmatpush1.bf16.xpose.msra.mxu0 0
    %117 = vmatprep.subr.bf16.mxu0 0
    %118 = vmatpush1.bf16.xpose.msra.mxu0 0
    %119 = vmatprep.subr.bf16.mxu0 0
    %120 = vmatpush1.bf16.xpose.msra.mxu0 0
    %121 = vmatprep.subr.bf16.mxu0 0
    %122 = vmatpush1.bf16.xpose.msra.mxu0 0
    %123 = vmatprep.subr.bf16.mxu0 0
    %124 = vmatpush1.bf16.xpose.msra.mxu0 0
    %125 = vmatprep.subr.bf16.mxu0 0
    %126 = vmatpush1.bf16.xpose.msra.mxu0 0
    %127 = vmatprep.subr.bf16.mxu0 0
    %128 = vmatpush1.bf16.xpose.msra.mxu0 0
    %129 = vmatprep.subr.bf16.mxu0 0
    %130 = vmatpush1.bf16.xpose.msra.mxu0 0
    %131 = vmatprep.subr.bf16.mxu0 0
    %132 = vmatpush1.bf16.xpose.msra.mxu0 0
    %133 = vmatprep.subr.bf16.mxu0 0
    %134 = vmatpush1.bf16.xpose.msra.mxu0 0
    %135 = vmatprep.subr.bf16.mxu0 0
    %136 = vmatpush1.bf16.xpose.msra.mxu0 0
    %137 = vmatprep.subr.bf16.mxu0 0
    %138 = vmatpush1.bf16.xpose.msra.mxu0 0
    %139 = vmatprep.subr.bf16.mxu0 0
    %140 = vmatpush1.bf16.xpose.msra.mxu0 0
    %141 = vmatprep.subr.bf16.mxu0 0
    %142 = vmatpush1.bf16.xpose.msra.mxu0 0
    %143 = vmatprep.subr.bf16.mxu0 0
    %144 = vmatpush1.bf16.xpose.msra.mxu0 0
    %145 = vmatprep.mubr.bf16.mxu0 0
    %146 = vmatmul.mubr.bf16.gmra.mrb[0].mxu0 %v108
    %v147 = vpop.f32.mrb[0].mxu0
    %v148 = vadd.f32 0.0, %v147
    %v149 = vpop.f32.mrb[0].mxu0
    %v150 = vpop.f32.mrb[0].mxu0
    %v151 = vpop.f32.mrb[0].mxu0
    %152 = vdwg.mxu0
    %v154 = vsel %vm86, %v104, 0
    %156 = vmatprep.subr.bf16.mxu0 0
    %157 = vmatpush1.bf16.xpose.msra.mxu0 %v154
    %158 = vmatprep.subr.bf16.mxu0 0
    %159 = vmatpush1.bf16.xpose.msra.mxu0 0
    %160 = vmatprep.subr.bf16.mxu0 0
    %161 = vmatpush1.bf16.xpose.msra.mxu0 0
    %162 = vmatprep.subr.bf16.mxu0 0
    %163 = vmatpush1.bf16.xpose.msra.mxu0 0
    %164 = vmatprep.subr.bf16.mxu0 0
    %165 = vmatpush1.bf16.xpose.msra.mxu0 0
    %166 = vmatprep.subr.bf16.mxu0 0
    %167 = vmatpush1.bf16.xpose.msra.mxu0 0
    %168 = vmatprep.subr.bf16.mxu0 0
    %169 = vmatpush1.bf16.xpose.msra.mxu0 0
    %170 = vmatprep.subr.bf16.mxu0 0
    %171 = vmatpush1.bf16.xpose.msra.mxu0 0
    %172 = vmatprep.subr.bf16.mxu0 0
    %173 = vmatpush1.bf16.xpose.msra.mxu0 0
    %174 = vmatprep.subr.bf16.mxu0 0
    %175 = vmatpush1.bf16.xpose.msra.mxu0 0
    %176 = vmatprep.subr.bf16.mxu0 0
    %177 = vmatpush1.bf16.xpose.msra.mxu0 0
    %178 = vmatprep.subr.bf16.mxu0 0
    %179 = vmatpush1.bf16.xpose.msra.mxu0 0
    %180 = vmatprep.subr.bf16.mxu0 0
    %181 = vmatpush1.bf16.xpose.msra.mxu0 0
    %182 = vmatprep.subr.bf16.mxu0 0
    %183 = vmatpush1.bf16.xpose.msra.mxu0 0
    %184 = vmatprep.subr.bf16.mxu0 0
    %185 = vmatpush1.bf16.xpose.msra.mxu0 0
    %186 = vmatprep.subr.bf16.mxu0 0
    %187 = vmatpush1.bf16.xpose.msra.mxu0 0
    %188 = vmatprep.mubr.bf16.mxu0 0
    %189 = vmatmul.mubr.bf16.gmra.mrb[0].mxu0 %v108
    %v190 = vpop.f32.mrb[0].mxu0
    %v191 = vadd.f32 0.0, %v190
    %v192 = vpop.f32.mrb[0].mxu0
    %v193 = vpop.f32.mrb[0].mxu0
    %v194 = vpop.f32.mrb[0].mxu0
    %195 = vdwg.mxu0
    %v197 = vsel %vm86, %v106, 0
    %199 = vmatprep.subr.bf16.mxu0 0
    %200 = vmatpush1.bf16.xpose.msra.mxu0 %v111
    %201 = vmatprep.subr.bf16.mxu0 0
    %202 = vmatpush1.bf16.xpose.msra.mxu0 0
    %203 = vmatprep.subr.bf16.mxu0 0
    %204 = vmatpush1.bf16.xpose.msra.mxu0 0
    %205 = vmatprep.subr.bf16.mxu0 0
    %206 = vmatpush1.bf16.xpose.msra.mxu0 0
    %207 = vmatprep.subr.bf16.mxu0 0
    %208 = vmatpush1.bf16.xpose.msra.mxu0 0
    %209 = vmatprep.subr.bf16.mxu0 0
    %210 = vmatpush1.bf16.xpose.msra.mxu0 0
    %211 = vmatprep.subr.bf16.mxu0 0
    %212 = vmatpush1.bf16.xpose.msra.mxu0 0
    %213 = vmatprep.subr.bf16.mxu0 0
    %214 = vmatpush1.bf16.xpose.msra.mxu0 0
    %215 = vmatprep.subr.bf16.mxu0 0
    %216 = vmatpush1.bf16.xpose.msra.mxu0 0
    %217 = vmatprep.subr.bf16.mxu0 0
    %218 = vmatpush1.bf16.xpose.msra.mxu0 0
    %219 = vmatprep.subr.bf16.mxu0 0
    %220 = vmatpush1.bf16.xpose.msra.mxu0 0
    %221 = vmatprep.subr.bf16.mxu0 0
    %222 = vmatpush1.bf16.xpose.msra.mxu0 0
    %223 = vmatprep.subr.bf16.mxu0 0
    %224 = vmatpush1.bf16.xpose.msra.mxu0 0
    %225 = vmatprep.subr.bf16.mxu0 0
    %226 = vmatpush1.bf16.xpose.msra.mxu0 0
    %227 = vmatprep.subr.bf16.mxu0 0
    %228 = vmatpush1.bf16.xpose.msra.mxu0 0
    %229 = vmatprep.subr.bf16.mxu0 0
    %230 = vmatpush1.bf16.xpose.msra.mxu0 0
    %231 = vmatprep.mubr.bf16.mxu0 0
    %232 = vmatmul.mubr.bf16.gmra.mrb[0].mxu0 %v197
    %v233 = vpop.f32.mrb[0].mxu0
    %v234 = vadd.f32 0.0, %v233
    %v235 = vpop.f32.mrb[0].mxu0
    %v236 = vpop.f32.mrb[0].mxu0
    %v237 = vpop.f32.mrb[0].mxu0
    %238 = vdwg.mxu0
    %239 = vmatprep.subr.bf16.mxu0 0
    %240 = vmatpush1.bf16.xpose.msra.mxu0 %v154
    %241 = vmatprep.subr.bf16.mxu0 0
    %242 = vmatpush1.bf16.xpose.msra.mxu0 0
    %243 = vmatprep.subr.bf16.mxu0 0
    %244 = vmatpush1.bf16.xpose.msra.mxu0 0
    %245 = vmatprep.subr.bf16.mxu0 0
    %246 = vmatpush1.bf16.xpose.msra.mxu0 0
    %247 = vmatprep.subr.bf16.mxu0 0
    %248 = vmatpush1.bf16.xpose.msra.mxu0 0
    %249 = vmatprep.subr.bf16.mxu0 0
    %250 = vmatpush1.bf16.xpose.msra.mxu0 0
    %251 = vmatprep.subr.bf16.mxu0 0
    %252 = vmatpush1.bf16.xpose.msra.mxu0 0
    %253 = vmatprep.subr.bf16.mxu0 0
    %254 = vmatpush1.bf16.xpose.msra.mxu0 0
    %255 = vmatprep.subr.bf16.mxu0 0
    %256 = vmatpush1.bf16.xpose.msra.mxu0 0
    %257 = vmatprep.subr.bf16.mxu0 0
    %258 = vmatpush1.bf16.xpose.msra.mxu0 0
    %259 = vmatprep.subr.bf16.mxu0 0
    %260 = vmatpush1.bf16.xpose.msra.mxu0 0
    %261 = vmatprep.subr.bf16.mxu0 0
    %262 = vmatpush1.bf16.xpose.msra.mxu0 0
    %263 = vmatprep.subr.bf16.mxu0 0
    %264 = vmatpush1.bf16.xpose.msra.mxu0 0
    %265 = vmatprep.subr.bf16.mxu0 0
    %266 = vmatpush1.bf16.xpose.msra.mxu0 0
    %267 = vmatprep.subr.bf16.mxu0 0
    %268 = vmatpush1.bf16.xpose.msra.mxu0 0
    %269 = vmatprep.subr.bf16.mxu0 0
    %270 = vmatpush1.bf16.xpose.msra.mxu0 0
    %271 = vmatprep.mubr.bf16.mxu0 0
    %272 = vmatmul.mubr.bf16.gmra.mrb[0].mxu0 %v197
    %v273 = vpop.f32.mrb[0].mxu0
    %v274 = vadd.f32 0.0, %v273
    %v275 = vpop.f32.mrb[0].mxu0
    %v276 = vpop.f32.mrb[0].mxu0
    %v277 = vpop.f32.mrb[0].mxu0
    %278 = vdwg.mxu0
    %v279 = vld [vmem:[#allocation4] sm:$0xff]
    %v280 = vsub.f32 %v148, 2.0
    %v281 = vmul.f32 %v280, 1.442695
    %v282 = vpow.pop %v281
    %vm283 = vcmask 64512
    %v284 = vsel %vm283, %v282, 0.0
    %285 = vadd.xlane.f32.xlu0 %v284
    %v286 = vpop.xlane.xlu0 %285
    %v287 = vsub.f32 %v191, 2.0
    %v288 = vmul.f32 %v287, 1.442695
    %v289 = vpow.pop %v288
    %v290 = vsel %vm283, %v289, 0.0
    %291 = vadd.xlane.f32.xlu0 %v290
    %v292 = vpop.xlane.xlu0 %291
    %v293 = vadd.f32 %v286, %v292
    %v294 = vadd.f32 %v279, %v293
    %vm295 = vcmask 7168
    %296 = vst.msk [vmem:[#allocation4] sm:$0xff] %vm295, %v294
    %v297 = vld [vmem:[#allocation5] sm:$0xff]
    %v298 = vsub.f32 %v234, 2.0
    %v299 = vmul.f32 %v298, 1.442695
    %v300 = vpow.pop %v299
    %v301 = vsel %vm283, %v300, 0.0
    %302 = vadd.xlane.f32.xlu0 %v301
    %v303 = vpop.xlane.xlu0 %302
    %v304 = vsub.f32 %v274, 2.0
    %v305 = vmul.f32 %v304, 1.442695
    %v306 = vpow.pop %v305
    %v307 = vsel %vm283, %v306, 0.0
    %308 = vadd.xlane.f32.xlu0 %v307
    %v309 = vpop.xlane.xlu0 %308
    %v310 = vadd.f32 %v303, %v309
    %v311 = vadd.f32 %v297, %v310
    %312 = vst.msk [vmem:[#allocation5] sm:$0xff] %vm295, %v311
    // Predicated region
    $region34: #{tpu_custom_call.1} parent=1 // pred_check
      %p313 = pneg %p53
    $region35: #{tpu_custom_call.1} parent=1 // pred_check_branch
      %315 = sbr.rel (%p313) target = $region37
    $region36: #{tpu_custom_call.1} parent=1 // pred_region
      %v316 = vld [vmem:[#allocation2] sm:$0xf]
      %v317 = vunpack.c.l.bf16 %v316
      %v318 = vld [vmem:[#allocation3] sm:$0xf]
      %v319 = vunpack.c.l.bf16 %v318
      %v320 = vmul.f32 %v317, %v317
      %v321 = vsel %vm86, %v320, 0.0
      %322 = vadd.xlane.f32.xlu0 %v321
      %v323 = vpop.xlane.xlu0 %322
      %v324 = vmul.f32 %v319, %v319
      %v325 = vsel %vm86, %v324, 0.0
      %326 = vadd.xlane.f32.xlu0 %v325
      %v327 = vpop.xlane.xlu0 %326
      %v328 = vmul.f32 %v317, %v319
      %v329 = vsel %vm86, %v328, 0.0
      %330 = vadd.xlane.f32.xlu0 %v329
      %v331 = vpop.xlane.xlu0 %330
      %v332 = vld [vmem:[#allocation4] sm:$0xff]
      %v333 = vsub.f32 %v323, 2.0
      %v334 = vmul.f32 %v333, 1.442695
      %v335 = vpow.pop %v334
      %v336 = vsub.f32 %v332, %v335
      %v337 = vmax.f32 %v336, 1e-30
      %v338 = vld [vmem:[#allocation5] sm:$0xff]
      %v339 = vsub.f32 %v327, 2.0
      %v340 = vmul.f32 %v339, 1.442695
      %v341 = vpow.pop %v340
      %v342 = vsub.f32 %v338, %v341
      %v343 = vmax.f32 %v342, 1e-30
      %v344 = vlog2.pop %v337
      %v345 = vmul.f32 %v344, 0.6931472
      %v346 = vadd.f32 %v345, 2.0
      %v347 = vlog2.pop %v343
      %v348 = vmul.f32 %v347, 0.6931472
      %v349 = vadd.f32 %v348, 2.0
      %v350 = vadd.f32 %v346, %v349
      %v351 = vmul.f32 %v331, 2.0
      %v352 = vsub.f32 %v350, %v351
      %353 = vst.msk [vmem:[%s4] sm:$0xff] %vm295, %v352
    $region37: #{tpu_custom_call.1} parent=1 // pred_fallthru
      _
    // Predicated region
    $region38: #{tpu_custom_call.1} parent=1 // pred_check
      _
    $region39: #{tpu_custom_call.1} parent=1 // pred_check_branch
      %355 = sbr.rel (0) target = $region41
    $region40: #{tpu_custom_call.1} parent=1 // pred_region
      _
    $region41: #{tpu_custom_call.1} parent=1 // pred_fallthru
      _
    // Predicated region
    $region42: #{tpu_custom_call.1} parent=1 // pred_check
      _
    $region43: #{tpu_custom_call.1} parent=1 // pred_check_branch
      %357 = sbr.rel (0) target = $region45
    $region44: #{tpu_custom_call.1} parent=1 // pred_region
      _
    $region45: #{tpu_custom_call.1} parent=1 // pred_fallthru
      _
    %358 = vsyncpa [#allocation7], 1
    %359 = vsyncpa [#allocation9], 1

</llo_original>
